<compile_context>
chip_gen: v7x
topology: tpu7x:2x2x1
jax: 0.10.0
libtpu: 0.0.40
codegen_flags: <defaults>
</compile_context>

<pallas_src>
import functools
from math import sqrt

import jax
import jax.numpy as jnp
from jax import lax
from jax.experimental import pallas as pl
from jax.experimental.pallas import tpu as pltpu


# ----------------------------------------------------------------------------
# Pallas kernel: fused Glimpse forward for one batch element
# ----------------------------------------------------------------------------

def _glimpse_kernel(ctx_ref, node_ref, mask_ref,
                    wq_ref, bq_ref, wkv_ref, bkv_ref, sel_ref,
                    o_ref, *, scale):
    # ctx_ref : (1, 1, E)    node_ref: (1, N, E)   mask_ref: (1, N, 1) float
    # wq_ref  : (E, H)       bq_ref  : (1, H)           (pre-transposed weights)
    # wkv_ref : (E, 2H)      bkv_ref : (1, 2H)
    # sel_ref : (H, num_heads)  block-diagonal head selector (sel[e,h] = 1 iff
    #                           embed position e belongs to head h)
    # o_ref   : (1, 1, H)
    ctx = ctx_ref[0]                                   # [1, E]
    x = node_ref[0]                                    # [N, E]
    mask = mask_ref[0]                                 # [N, 1]  (1.0 == masked)
    sel = sel_ref[...]                                 # [H, heads]
    H = wq_ref.shape[1]

    # --- projections (weights pre-transposed, so no in-kernel .T) ---
    q = (jnp.dot(ctx, wq_ref[...], preferred_element_type=jnp.float32)
         + bq_ref[...])                                # [1, H]
    kv = (jnp.dot(x, wkv_ref[...], preferred_element_type=jnp.float32)
          + bkv_ref[...])                              # [N, 2H]
    k = kv[:, :H]                                      # [N, H]
    v = kv[:, H:]                                      # [N, H]

    # --- per-head scores without per-head slicing ---
    # scores[n, h] = sum_{e in head h} q[e] * k[n, e]
    scores = jnp.dot(k * q, sel,
                     preferred_element_type=jnp.float32) * scale     # [N, heads]
    scores = jnp.where(mask > 0.5, -1000000.0, scores)

    # --- softmax over items (axis 0), per head ---
    m = jnp.max(scores, axis=0, keepdims=True)
    e = jnp.exp(scores - m)
    p = e / jnp.sum(e, axis=0, keepdims=True)                        # [N, heads]

    # --- weighted value sum: expand head weights back to the embed axis ---
    # p_full[n, e] = p[n, head_of(e)]
    p_full = lax.dot_general(p, sel, (((1,), (1,)), ((), ())),
                             preferred_element_type=jnp.float32)     # [N, H]
    o_ref[0] = jnp.sum(p_full * v, axis=0, keepdims=True)            # [1, H]


# ----------------------------------------------------------------------------
# Wrapper
# ----------------------------------------------------------------------------

def glimpse(context, node_embedding, mask, params, *, num_heads):
    """Pallas Glimpse forward.  Weights stored PyTorch-style [out, in]."""
    B, N, E = node_embedding.shape
    H = params["wq"].shape[0]
    assert H % num_heads == 0
    dk = H // num_heads

    if mask is None:
        mask_f = jnp.zeros((B, N), jnp.float32)
    else:
        mask_f = mask.astype(jnp.float32)

    # One-time layout prep (outside the kernel): transpose weights to
    # [Din, Dout], fuse W_k / W_v, build the constant head-selector matrix.
    wq_t = params["wq"].T                                             # [E, H]
    wkv_t = jnp.concatenate([params["wk"].T, params["wv"].T], axis=1)  # [E, 2H]
    bkv = jnp.concatenate([params["bk"], params["bv"]])               # [2H]
    sel = (jnp.arange(H)[:, None] // dk ==
           jnp.arange(num_heads)[None, :]).astype(jnp.float32)        # [H, heads]

    kernel = functools.partial(_glimpse_kernel,
                               scale=1.0 / sqrt(H / num_heads))
    full = lambda i: (0, 0)
    out = pl.pallas_call(
        kernel,
        out_shape=jax.ShapeDtypeStruct((B, 1, H), jnp.float32),
        grid=(B,),
        in_specs=[
            pl.BlockSpec((1, 1, E), lambda i: (i, 0, 0)),   # context
            pl.BlockSpec((1, N, E), lambda i: (i, 0, 0)),   # node embedding
            pl.BlockSpec((1, N, 1), lambda i: (i, 0, 0)),   # mask (float)
            pl.BlockSpec((E, H), full), pl.BlockSpec((1, H), full),
            pl.BlockSpec((E, 2 * H), full), pl.BlockSpec((1, 2 * H), full),
            pl.BlockSpec((H, num_heads), full),
        ],
        out_specs=pl.BlockSpec((1, 1, H), lambda i: (i, 0, 0)),
        compiler_params=pltpu.CompilerParams(
            dimension_semantics=("parallel",)),              # v7x: 2 TCs
    )(context.reshape(B, 1, E), node_embedding, mask_f.reshape(B, N, 1),
      wq_t, params["bq"].reshape(1, H),
      wkv_t, bkv.reshape(1, 2 * H), sel)
    return out.reshape(B, H)


# ----------------------------------------------------------------------------
# Pure-JAX reference (mirrors the PyTorch forward exactly)
# ----------------------------------------------------------------------------

def glimpse_ref(context, node_embedding, mask, params, num_heads):
    B, N, E = node_embedding.shape
    H = params["wq"].shape[0]
    dk = H // num_heads
    q = context @ params["wq"].T + params["bq"]                       # [B, H]
    k = node_embedding @ params["wk"].T + params["bk"]                # [B, N, H]
    v = node_embedding @ params["wv"].T + params["bv"]                # [B, N, H]
    qh = q.reshape(B, num_heads, dk)
    kh = k.reshape(B, N, num_heads, dk).transpose(0, 2, 1, 3)
    vh = v.reshape(B, N, num_heads, dk).transpose(0, 2, 1, 3)
    qk = jnp.einsum('ijl,ijkl->ijk', qh, kh) * (1.0 / sqrt(H / num_heads))
    if mask is not None:
        qk = jnp.where(mask[:, None, :], -1000000.0, qk)
    w = jax.nn.softmax(qk, axis=-1)
    ret = jnp.einsum('ijk,ijkl->ijl', w, vh)
    return ret.reshape(B, -1)


# ----------------------------------------------------------------------------

if __name__ == "__main__":
    B, N = 2, 8                  # batch, num_items
    E = H = 32                   # embed_dim == hidden_dim
    N_HEAD = 4

    root = jax.random.PRNGKey(0)
    ks = jax.random.split(root, 9)
    params = {
        "wq": 0.1 * jax.random.normal(ks[0], (H, E), jnp.float32),
        "bq": 0.01 * jax.random.normal(ks[1], (H,), jnp.float32),
        "wk": 0.1 * jax.random.normal(ks[2], (H, E), jnp.float32),
        "bk": 0.01 * jax.random.normal(ks[3], (H,), jnp.float32),
        "wv": 0.1 * jax.random.normal(ks[4], (H, E), jnp.float32),
        "bv": 0.01 * jax.random.normal(ks[5], (H,), jnp.float32),
    }
    context = jax.random.normal(ks[6], (B, E), jnp.float32)
    node_embedding = jax.random.normal(ks[7], (B, N, E), jnp.float32)
    mask = (jnp.zeros((B, N), dtype=jnp.bool_)
            .at[0, 3].set(True).at[1, 0].set(True).at[1, 5].set(True))

    fn = jax.jit(functools.partial(glimpse, num_heads=N_HEAD))
    out = fn(context, node_embedding, mask, params)
    jax.block_until_ready(out)

    ref = glimpse_ref(context, node_embedding, mask, params, N_HEAD)
    assert out.shape == (B, H)
    err = float(jnp.max(jnp.abs(out - ref)))
    assert jnp.allclose(out, ref, atol=1e-4, rtol=1e-4), f"max err {err}"
    assert bool(jnp.all(jnp.isfinite(out)))
    print("KERNEL_OK")
</pallas_src>

<mosaic_0001>
module attributes {stable_mosaic.version = 11 : i64} {
  func.func @_glimpse_kernel(%arg0: i32, %arg1: memref<1x1x32xf32, #tpu.memory_space<vmem>>, %arg2: memref<1x8x32xf32, #tpu.memory_space<vmem>>, %arg3: memref<1x8x1xf32, #tpu.memory_space<vmem>>, %arg4: memref<32x32xf32, #tpu.memory_space<vmem>>, %arg5: memref<1x32xf32, #tpu.memory_space<vmem>>, %arg6: memref<32x64xf32, #tpu.memory_space<vmem>>, %arg7: memref<1x64xf32, #tpu.memory_space<vmem>>, %arg8: memref<32x4xf32, #tpu.memory_space<vmem>>, %arg9: memref<1x1x32xf32, #tpu.memory_space<vmem>>) attributes {dimension_semantics = [#tpu.dimension_semantics<parallel>], iteration_bounds = array<i64: 2>, scalar_prefetch = 0 : i64, scratch_operands = 0 : i64, tpu.core_type = #tpu.core_type<tc>, window_params = [{transform_indices = @transform_0, window_bounds = array<i64: 1, 1, 32>}, {transform_indices = @transform_1, window_bounds = array<i64: 1, 8, 32>}, {transform_indices = @transform_2, window_bounds = array<i64: 1, 8, 1>}, {pipeline_mode = #tpu.pipeline_mode<synchronous>, transform_indices = @transform_3, window_bounds = array<i64: 32, 32>}, {pipeline_mode = #tpu.pipeline_mode<synchronous>, transform_indices = @transform_4, window_bounds = array<i64: 1, 32>}, {pipeline_mode = #tpu.pipeline_mode<synchronous>, transform_indices = @transform_5, window_bounds = array<i64: 32, 64>}, {pipeline_mode = #tpu.pipeline_mode<synchronous>, transform_indices = @transform_6, window_bounds = array<i64: 1, 64>}, {pipeline_mode = #tpu.pipeline_mode<synchronous>, transform_indices = @transform_7, window_bounds = array<i64: 32, 4>}, {transform_indices = @transform_8, window_bounds = array<i64: 1, 1, 32>}]} {
    %c0 = arith.constant 0 : index
    %c0_0 = arith.constant 0 : index
    %c0_1 = arith.constant 0 : index
    %0 = vector.load %arg1[%c0, %c0_0, %c0_1] : memref<1x1x32xf32, #tpu.memory_space<vmem>>, vector<1x1x32xf32>
    %1 = vector.shape_cast %0 : vector<1x1x32xf32> to vector<1x32xf32>
    %c0_2 = arith.constant 0 : index
    %c0_3 = arith.constant 0 : index
    %c0_4 = arith.constant 0 : index
    %2 = vector.load %arg2[%c0_2, %c0_3, %c0_4] : memref<1x8x32xf32, #tpu.memory_space<vmem>>, vector<1x8x32xf32>
    %3 = vector.shape_cast %2 : vector<1x8x32xf32> to vector<8x32xf32>
    %c0_5 = arith.constant 0 : index
    %c0_6 = arith.constant 0 : index
    %c0_7 = arith.constant 0 : index
    %4 = vector.load %arg3[%c0_5, %c0_6, %c0_7] : memref<1x8x1xf32, #tpu.memory_space<vmem>>, vector<1x8x1xf32>
    %5 = vector.shape_cast %4 : vector<1x8x1xf32> to vector<8x1xf32>
    %c0_8 = arith.constant 0 : index
    %c0_9 = arith.constant 0 : index
    %6 = vector.load %arg8[%c0_8, %c0_9] : memref<32x4xf32, #tpu.memory_space<vmem>>, vector<32x4xf32>
    %c0_10 = arith.constant 0 : index
    %c0_11 = arith.constant 0 : index
    %7 = vector.load %arg4[%c0_10, %c0_11] : memref<32x32xf32, #tpu.memory_space<vmem>>, vector<32x32xf32>
    %cst = arith.constant dense<0.000000e+00> : vector<1x32xf32>
    %8 = tpu.matmul %1, %7, %cst {dimension_numbers = #tpu.dot_dimension_numbers<[1], [0], [0], [1], [0, 0, 1, 1], [], []>} : vector<1x32xf32>, vector<32x32xf32>, vector<1x32xf32> -> vector<1x32xf32>
    %c0_12 = arith.constant 0 : index
    %c0_13 = arith.constant 0 : index
    %9 = vector.load %arg5[%c0_12, %c0_13] : memref<1x32xf32, #tpu.memory_space<vmem>>, vector<1x32xf32>
    %10 = arith.addf %8, %9 : vector<1x32xf32>
    %c0_14 = arith.constant 0 : index
    %c0_15 = arith.constant 0 : index
    %11 = vector.load %arg6[%c0_14, %c0_15] : memref<32x64xf32, #tpu.memory_space<vmem>>, vector<32x64xf32>
    %cst_16 = arith.constant dense<0.000000e+00> : vector<8x64xf32>
    %12 = tpu.matmul %3, %11, %cst_16 {dimension_numbers = #tpu.dot_dimension_numbers<[1], [0], [0], [1], [0, 0, 1, 1], [], []>} : vector<8x32xf32>, vector<32x64xf32>, vector<8x64xf32> -> vector<8x64xf32>
    %c0_17 = arith.constant 0 : index
    %c0_18 = arith.constant 0 : index
    %13 = vector.load %arg7[%c0_17, %c0_18] : memref<1x64xf32, #tpu.memory_space<vmem>>, vector<1x64xf32>
    %14 = vector.broadcast %13 : vector<1x64xf32> to vector<8x64xf32>
    %15 = arith.addf %12, %14 : vector<8x64xf32>
    %16 = vector.extract_strided_slice %15 {offsets = [0, 0], sizes = [8, 32], strides = [1, 1]} : vector<8x64xf32> to vector<8x32xf32>
    %17 = vector.extract_strided_slice %15 {offsets = [0, 32], sizes = [8, 32], strides = [1, 1]} : vector<8x64xf32> to vector<8x32xf32>
    %18 = vector.broadcast %10 : vector<1x32xf32> to vector<8x32xf32>
    %19 = arith.mulf %16, %18 : vector<8x32xf32>
    %cst_19 = arith.constant dense<0.000000e+00> : vector<8x4xf32>
    %20 = tpu.matmul %19, %6, %cst_19 {dimension_numbers = #tpu.dot_dimension_numbers<[1], [0], [0], [1], [0, 0, 1, 1], [], []>} : vector<8x32xf32>, vector<32x4xf32>, vector<8x4xf32> -> vector<8x4xf32>
    %cst_20 = arith.constant 0.353553385 : f32
    %21 = vector.broadcast %cst_20 : f32 to vector<8x4xf32>
    %22 = arith.mulf %20, %21 : vector<8x4xf32>
    %cst_21 = arith.constant 5.000000e-01 : f32
    %23 = vector.broadcast %cst_21 : f32 to vector<8x1xf32>
    %24 = arith.cmpf ogt, %5, %23 : vector<8x1xf32>
    %cst_22 = arith.constant -1.000000e+06 : f32
    %25 = vector.shape_cast %24 : vector<8x1xi1> to vector<8x1xi1>
    %26 = vector.broadcast %25 : vector<8x1xi1> to vector<8x4xi1>
    %27 = vector.broadcast %cst_22 : f32 to vector<8x4xf32>
    %28 = arith.select %26, %27, %22 : vector<8x4xi1>, vector<8x4xf32>
    %cst_23 = arith.constant dense<0xFF800000> : vector<4xf32>
    %29 = vector.multi_reduction <maximumf>, %28, %cst_23 [0] : vector<8x4xf32> to vector<4xf32>
    %30 = vector.shape_cast %29 : vector<4xf32> to vector<1x4xf32>
    %31 = vector.broadcast %30 : vector<1x4xf32> to vector<8x4xf32>
    %32 = arith.subf %28, %31 : vector<8x4xf32>
    %33 = math.exp %32 : vector<8x4xf32>
    %cst_24 = arith.constant dense<0.000000e+00> : vector<4xf32>
    %34 = vector.multi_reduction <add>, %33, %cst_24 [0] : vector<8x4xf32> to vector<4xf32>
    %35 = vector.shape_cast %34 : vector<4xf32> to vector<1x4xf32>
    %36 = vector.broadcast %35 : vector<1x4xf32> to vector<8x4xf32>
    %37 = arith.divf %33, %36 : vector<8x4xf32>
    %cst_25 = arith.constant dense<0.000000e+00> : vector<8x32xf32>
    %38 = tpu.matmul %37, %6, %cst_25 {dimension_numbers = #tpu.dot_dimension_numbers<[1], [1], [0], [0], [0, 0, 1, 0], [], []>} : vector<8x4xf32>, vector<32x4xf32>, vector<8x32xf32> -> vector<8x32xf32>
    %39 = arith.mulf %38, %17 : vector<8x32xf32>
    %cst_26 = arith.constant dense<0.000000e+00> : vector<32xf32>
    %40 = vector.multi_reduction <add>, %39, %cst_26 [0] : vector<8x32xf32> to vector<32xf32>
    %41 = vector.shape_cast %40 : vector<32xf32> to vector<1x32xf32>
    %c0_27 = arith.constant 0 : index
    %c0_28 = arith.constant 0 : index
    %c0_29 = arith.constant 0 : index
    %42 = vector.load %arg9[%c0_27, %c0_28, %c0_29] : memref<1x1x32xf32, #tpu.memory_space<vmem>>, vector<1x1x32xf32>
    %43 = vector.shape_cast %42 : vector<1x1x32xf32> to vector<1x32xf32>
    %44 = vector.shape_cast %41 : vector<1x32xf32> to vector<1x1x32xf32>
    tpu.vector_store %arg9[%c0_27, %c0_28, %c0_29], %44 {strides = array<i32>} : memref<1x1x32xf32, #tpu.memory_space<vmem>>, vector<1x1x32xf32>,
    return
  }
  func.func @transform_0(%arg0: i32) -> (i32, i32, i32) {
    %c0_i32 = arith.constant 0 : i32
    %c0_i32_0 = arith.constant 0 : i32
    %c0_i32_1 = arith.constant 0 : i32
    return %arg0, %c0_i32, %c0_i32_0 : i32, i32, i32
  }
  func.func @transform_1(%arg0: i32) -> (i32, i32, i32) {
    %c0_i32 = arith.constant 0 : i32
    %c0_i32_0 = arith.constant 0 : i32
    %c0_i32_1 = arith.constant 0 : i32
    return %arg0, %c0_i32, %c0_i32_0 : i32, i32, i32
  }
  func.func @transform_2(%arg0: i32) -> (i32, i32, i32) {
    %c0_i32 = arith.constant 0 : i32
    %c0_i32_0 = arith.constant 0 : i32
    %c0_i32_1 = arith.constant 0 : i32
    return %arg0, %c0_i32, %c0_i32_0 : i32, i32, i32
  }
  func.func @transform_3(%arg0: i32) -> (i32, i32) {
    %c0_i32 = arith.constant 0 : i32
    %c0_i32_0 = arith.constant 0 : i32
    %c0_i32_1 = arith.constant 0 : i32
    return %c0_i32, %c0_i32_0 : i32, i32
  }
  func.func @transform_4(%arg0: i32) -> (i32, i32) {
    %c0_i32 = arith.constant 0 : i32
    %c0_i32_0 = arith.constant 0 : i32
    %c0_i32_1 = arith.constant 0 : i32
    return %c0_i32, %c0_i32_0 : i32, i32
  }
  func.func @transform_5(%arg0: i32) -> (i32, i32) {
    %c0_i32 = arith.constant 0 : i32
    %c0_i32_0 = arith.constant 0 : i32
    %c0_i32_1 = arith.constant 0 : i32
    return %c0_i32, %c0_i32_0 : i32, i32
  }
  func.func @transform_6(%arg0: i32) -> (i32, i32) {
    %c0_i32 = arith.constant 0 : i32
    %c0_i32_0 = arith.constant 0 : i32
    %c0_i32_1 = arith.constant 0 : i32
    return %c0_i32, %c0_i32_0 : i32, i32
  }
  func.func @transform_7(%arg0: i32) -> (i32, i32) {
    %c0_i32 = arith.constant 0 : i32
    %c0_i32_0 = arith.constant 0 : i32
    %c0_i32_1 = arith.constant 0 : i32
    return %c0_i32, %c0_i32_0 : i32, i32
  }
  func.func @transform_8(%arg0: i32) -> (i32, i32, i32) {
    %c0_i32 = arith.constant 0 : i32
    %c0_i32_0 = arith.constant 0 : i32
    %c0_i32_1 = arith.constant 0 : i32
    return %arg0, %c0_i32, %c0_i32_0 : i32, i32, i32
  }
}

</mosaic_0001>

<llo_original>
// kernel: glimpse.1
$region0: #{glimpse.1}
  #allocation0 [shape = 'u32[]', space=smem, size = 0x4, offset = 0x4, fixed_abs, tag = 'smem constant byte address 0x4 - core index']
  #allocation1 [shape = 'u32[144,128]{1,0:T(1,128)}', space=vmem, size = 0x12000, scoped, tag = 'internal scratch']
  %s0 = inlined_call_operand.vmem [shape: f32[2,1,32], index: 0, kind: input, shape index: {}]
  %s1 = inlined_call_operand.vmem [shape: f32[2,8,32], index: 1, kind: input, shape index: {}]
  %s2 = inlined_call_operand.vmem [shape: f32[2,8,1], index: 2, kind: input, shape index: {}]
  %s3 = inlined_call_operand.vmem [shape: f32[32,32], index: 3, kind: input, shape index: {}]
  %s4 = inlined_call_operand.vmem [shape: f32[1,32], index: 4, kind: input, shape index: {}]
  %s5 = inlined_call_operand.vmem [shape: f32[32,64], index: 5, kind: input, shape index: {}]
  %s6 = inlined_call_operand.vmem [shape: f32[1,64], index: 6, kind: input, shape index: {}]
  %s7 = inlined_call_operand.vmem [shape: f32[32,4], index: 7, kind: input, shape index: {}]
  %s8 = inlined_call_operand.hbm [shape: f32[2,1,32], index: 8, kind: output, shape index: {}]
  %s9 = sld [smem:[#allocation0]]
  $region65: #{glimpse.1} parent=0
    _
  %s11 = ssub.s32 1, %s9
  %s12 = scalar_select 0, %s11, %s9
  $region1: #{glimpse.1} parent=0
    #allocation2 [shape = 'u8[1024]{0}', space=vmem, size = 0x400, scoped, tag = 'output window, operand 0']
    #allocation3 [shape = 's32[2]{0}', space=sflag, size = 0x8, scoped, tag = 'scoped memory for glimpse.1']
    %13 = vsyncpa [#allocation3], 0
    %s14 = scalar_lea.sflag [#allocation3], 1
    %15 = vsyncpa %s14, 0
    loop: start=0, step=1, limit=4
    $region2: #{glimpse.1} parent=1 // loop_pre_header
      _
    $region3: #{glimpse.1} parent=1 // loop_header
      %s17 = sphi 0, %s21
      %p18 = scmp.ge.s32.totalorder %s17, 4
      %s27 = sphi 0, %s29
      %s30 = sphi 0, %s27
      %s31 = sphi 0, %s30
      %s47 = sphi 0, %s31
      %s53 = sphi 0, %s55
      %s56 = sphi 0, %s53
      %s57 = sphi 0, %s56
      %s73 = sphi 0, %s57
      %s79 = sphi 0, %s81
      %s82 = sphi 0, %s79
      %s83 = sphi 0, %s82
      %s99 = sphi 0, %s83
      %s103 = sphi 0, %s103
      %s105 = sphi 0, %s103
      %s106 = sphi 0, %s105
      %s120 = sphi 0, %s106
      %s124 = sphi 0, %s124
      %s126 = sphi 0, %s124
      %s127 = sphi 0, %s126
      %s141 = sphi 0, %s127
      %s145 = sphi 0, %s145
      %s147 = sphi 0, %s145
      %s148 = sphi 0, %s147
      %s162 = sphi 0, %s148
      %s166 = sphi 0, %s166
      %s168 = sphi 0, %s166
      %s169 = sphi 0, %s168
      %s183 = sphi 0, %s169
      %s187 = sphi 0, %s187
      %s189 = sphi 0, %s187
      %s190 = sphi 0, %s189
      %s204 = sphi 0, %s190
      %s210 = sphi 0, %s212
      %s213 = sphi 0, %s210
      %s214 = sphi 0, %s213
      %s230 = sphi 0, %s214
    $region4: #{glimpse.1} parent=1 // loop_header_branch
      %20 = sbr.rel (%p18) target = $region8
    $region5: #{glimpse.1} parent=1 // loop_body
      %s22 = ssub.s32 %s17, 1
      %s23 = ssub.s32 %s17, 2
      %s24 = sadd.s32 %s17, 1
      %s25 = ssub.s32 %s17, %s24
      %p26 = scmp.eq.s32.totalorder %s25, 0
      %s28 = sadd.s32 %s27, 1
      %s29 = scalar_select %p26, %s27, %s28
      %p32 = pneg %p26
      %p33 = scmp.eq.s32.totalorder %s17, 1
      %p34 = por %p32, %p33
      %p35 = scmp.ne.s32.totalorder %s27, %s30
      %p36 = scmp.eq.s32.totalorder %s17, 0
      %p37 = por %p35, %p36
      %p38 = scmp.ne.s32.totalorder %s27, %s30
      %p39 = scmp.eq.s32.totalorder %s22, 1
      %p40 = por %p38, %p39
      %p41 = scmp.ne.s32.totalorder %s30, %s31
      %p42 = scmp.eq.s32.totalorder %s22, 0
      %p43 = por %p41, %p42
      %p44 = scmp.ne.s32.totalorder %s30, %s31
      %p45 = scmp.eq.s32.totalorder %s23, 1
      %p46 = por %p44, %p45
      %p48 = scmp.ne.s32.totalorder %s31, %s47
      %p49 = scmp.eq.s32.totalorder %s23, 0
      %p50 = por %p48, %p49
      %s51 = ssub.s32 %s17, %s24
      %p52 = scmp.eq.s32.totalorder %s51, 0
      %s54 = sadd.s32 %s53, 1
      %s55 = scalar_select %p52, %s53, %s54
      %p58 = pneg %p52
      %p59 = scmp.eq.s32.totalorder %s17, 1
      %p60 = por %p58, %p59
      %p61 = scmp.ne.s32.totalorder %s53, %s56
      %p62 = scmp.eq.s32.totalorder %s17, 0
      %p63 = por %p61, %p62
      %p64 = scmp.ne.s32.totalorder %s53, %s56
      %p65 = scmp.eq.s32.totalorder %s22, 1
      %p66 = por %p64, %p65
      %p67 = scmp.ne.s32.totalorder %s56, %s57
      %p68 = scmp.eq.s32.totalorder %s22, 0
      %p69 = por %p67, %p68
      %p70 = scmp.ne.s32.totalorder %s56, %s57
      %p71 = scmp.eq.s32.totalorder %s23, 1
      %p72 = por %p70, %p71
      %p74 = scmp.ne.s32.totalorder %s57, %s73
      %p75 = scmp.eq.s32.totalorder %s23, 0
      %p76 = por %p74, %p75
      %s77 = ssub.s32 %s17, %s24
      %p78 = scmp.eq.s32.totalorder %s77, 0
      %s80 = sadd.s32 %s79, 1
      %s81 = scalar_select %p78, %s79, %s80
      %p84 = pneg %p78
      %p85 = scmp.eq.s32.totalorder %s17, 1
      %p86 = por %p84, %p85
      %p87 = scmp.ne.s32.totalorder %s79, %s82
      %p88 = scmp.eq.s32.totalorder %s17, 0
      %p89 = por %p87, %p88
      %p90 = scmp.ne.s32.totalorder %s79, %s82
      %p91 = scmp.eq.s32.totalorder %s22, 1
      %p92 = por %p90, %p91
      %p93 = scmp.ne.s32.totalorder %s82, %s83
      %p94 = scmp.eq.s32.totalorder %s22, 0
      %p95 = por %p93, %p94
      %p96 = scmp.ne.s32.totalorder %s82, %s83
      %p97 = scmp.eq.s32.totalorder %s23, 1
      %p98 = por %p96, %p97
      %p100 = scmp.ne.s32.totalorder %s83, %s99
      %p101 = scmp.eq.s32.totalorder %s23, 0
      %p102 = por %p100, %p101
      %s104 = sadd.s32 %s103, 1
      %p107 = scmp.eq.s32.totalorder %s17, 1
      %p108 = scmp.ne.s32.totalorder %s103, %s105
      %p109 = scmp.eq.s32.totalorder %s17, 0
      %p110 = por %p108, %p109
      %p111 = scmp.ne.s32.totalorder %s103, %s105
      %p112 = scmp.eq.s32.totalorder %s22, 1
      %p113 = por %p111, %p112
      %p114 = scmp.ne.s32.totalorder %s105, %s106
      %p115 = scmp.eq.s32.totalorder %s22, 0
      %p116 = por %p114, %p115
      %p117 = scmp.ne.s32.totalorder %s105, %s106
      %p118 = scmp.eq.s32.totalorder %s23, 1
      %p119 = por %p117, %p118
      %p121 = scmp.ne.s32.totalorder %s106, %s120
      %p122 = scmp.eq.s32.totalorder %s23, 0
      %p123 = por %p121, %p122
      %s125 = sadd.s32 %s124, 1
      %p128 = scmp.eq.s32.totalorder %s17, 1
      %p129 = scmp.ne.s32.totalorder %s124, %s126
      %p130 = scmp.eq.s32.totalorder %s17, 0
      %p131 = por %p129, %p130
      %p132 = scmp.ne.s32.totalorder %s124, %s126
      %p133 = scmp.eq.s32.totalorder %s22, 1
      %p134 = por %p132, %p133
      %p135 = scmp.ne.s32.totalorder %s126, %s127
      %p136 = scmp.eq.s32.totalorder %s22, 0
      %p137 = por %p135, %p136
      %p138 = scmp.ne.s32.totalorder %s126, %s127
      %p139 = scmp.eq.s32.totalorder %s23, 1
      %p140 = por %p138, %p139
      %p142 = scmp.ne.s32.totalorder %s127, %s141
      %p143 = scmp.eq.s32.totalorder %s23, 0
      %p144 = por %p142, %p143
      %s146 = sadd.s32 %s145, 1
      %p149 = scmp.eq.s32.totalorder %s17, 1
      %p150 = scmp.ne.s32.totalorder %s145, %s147
      %p151 = scmp.eq.s32.totalorder %s17, 0
      %p152 = por %p150, %p151
      %p153 = scmp.ne.s32.totalorder %s145, %s147
      %p154 = scmp.eq.s32.totalorder %s22, 1
      %p155 = por %p153, %p154
      %p156 = scmp.ne.s32.totalorder %s147, %s148
      %p157 = scmp.eq.s32.totalorder %s22, 0
      %p158 = por %p156, %p157
      %p159 = scmp.ne.s32.totalorder %s147, %s148
      %p160 = scmp.eq.s32.totalorder %s23, 1
      %p161 = por %p159, %p160
      %p163 = scmp.ne.s32.totalorder %s148, %s162
      %p164 = scmp.eq.s32.totalorder %s23, 0
      %p165 = por %p163, %p164
      %s167 = sadd.s32 %s166, 1
      %p170 = scmp.eq.s32.totalorder %s17, 1
      %p171 = scmp.ne.s32.totalorder %s166, %s168
      %p172 = scmp.eq.s32.totalorder %s17, 0
      %p173 = por %p171, %p172
      %p174 = scmp.ne.s32.totalorder %s166, %s168
      %p175 = scmp.eq.s32.totalorder %s22, 1
      %p176 = por %p174, %p175
      %p177 = scmp.ne.s32.totalorder %s168, %s169
      %p178 = scmp.eq.s32.totalorder %s22, 0
      %p179 = por %p177, %p178
      %p180 = scmp.ne.s32.totalorder %s168, %s169
      %p181 = scmp.eq.s32.totalorder %s23, 1
      %p182 = por %p180, %p181
      %p184 = scmp.ne.s32.totalorder %s169, %s183
      %p185 = scmp.eq.s32.totalorder %s23, 0
      %p186 = por %p184, %p185
      %s188 = sadd.s32 %s187, 1
      %p191 = scmp.eq.s32.totalorder %s17, 1
      %p192 = scmp.ne.s32.totalorder %s187, %s189
      %p193 = scmp.eq.s32.totalorder %s17, 0
      %p194 = por %p192, %p193
      %p195 = scmp.ne.s32.totalorder %s187, %s189
      %p196 = scmp.eq.s32.totalorder %s22, 1
      %p197 = por %p195, %p196
      %p198 = scmp.ne.s32.totalorder %s189, %s190
      %p199 = scmp.eq.s32.totalorder %s22, 0
      %p200 = por %p198, %p199
      %p201 = scmp.ne.s32.totalorder %s189, %s190
      %p202 = scmp.eq.s32.totalorder %s23, 1
      %p203 = por %p201, %p202
      %p205 = scmp.ne.s32.totalorder %s190, %s204
      %p206 = scmp.eq.s32.totalorder %s23, 0
      %p207 = por %p205, %p206
      %s208 = ssub.s32 %s17, %s24
      %p209 = scmp.eq.s32.totalorder %s208, 0
      %s211 = sadd.s32 %s210, 1
      %s212 = scalar_select %p209, %s210, %s211
      %p215 = pneg %p209
      %p216 = scmp.eq.s32.totalorder %s17, 1
      %p217 = por %p215, %p216
      %p218 = scmp.ne.s32.totalorder %s210, %s213
      %p219 = scmp.eq.s32.totalorder %s17, 0
      %p220 = por %p218, %p219
      %p221 = scmp.ne.s32.totalorder %s210, %s213
      %p222 = scmp.eq.s32.totalorder %s22, 1
      %p223 = por %p221, %p222
      %p224 = scmp.ne.s32.totalorder %s213, %s214
      %p225 = scmp.eq.s32.totalorder %s22, 0
      %p226 = por %p224, %p225
      %p227 = scmp.ne.s32.totalorder %s213, %s214
      %p228 = scmp.eq.s32.totalorder %s23, 1
      %p229 = por %p227, %p228
      %p231 = scmp.ne.s32.totalorder %s214, %s230
      %p232 = scmp.eq.s32.totalorder %s23, 0
      %p233 = por %p231, %p232
      %p234 = scmp.le.s32.totalorder 1, %s17
      %p235 = scmp.lt.s32.totalorder %s17, 3
      %p236 = pnand %p234, %p235
      %p237 = pneg %p236
      // Predicated region
      $region9: #{glimpse.1} parent=5 // pred_check
        _
      $region10: #{glimpse.1} parent=5 // pred_check_branch
        %239 = sbr.rel (%p236) target = $region12
      $region11: #{glimpse.1} parent=5 // pred_region
        %s240 = ssub.s32 %s17, 1
        // Predicated region
        $region13: #{glimpse.1} parent=11 // pred_check
          %p241 = pneg %p116
        $region14: #{glimpse.1} parent=11 // pred_check_branch
          %243 = sbr.rel (%p241) target = $region16
        $region15: #{glimpse.1} parent=11 // pred_region
          _
        $region16: #{glimpse.1} parent=11 // pred_fallthru
          _
        // Predicated region
        $region17: #{glimpse.1} parent=11 // pred_check
          %p244 = pneg %p137
        $region18: #{glimpse.1} parent=11 // pred_check_branch
          %246 = sbr.rel (%p244) target = $region20
        $region19: #{glimpse.1} parent=11 // pred_region
          _
        $region20: #{glimpse.1} parent=11 // pred_fallthru
          _
        // Predicated region
        $region21: #{glimpse.1} parent=11 // pred_check
          %p247 = pneg %p158
        $region22: #{glimpse.1} parent=11 // pred_check_branch
          %249 = sbr.rel (%p247) target = $region24
        $region23: #{glimpse.1} parent=11 // pred_region
          _
        $region24: #{glimpse.1} parent=11 // pred_fallthru
          _
        // Predicated region
        $region25: #{glimpse.1} parent=11 // pred_check
          %p250 = pneg %p179
        $region26: #{glimpse.1} parent=11 // pred_check_branch
          %252 = sbr.rel (%p250) target = $region28
        $region27: #{glimpse.1} parent=11 // pred_region
          _
        $region28: #{glimpse.1} parent=11 // pred_fallthru
          _
        // Predicated region
        $region29: #{glimpse.1} parent=11 // pred_check
          %p253 = pneg %p200
        $region30: #{glimpse.1} parent=11 // pred_check_branch
          %255 = sbr.rel (%p253) target = $region32
        $region31: #{glimpse.1} parent=11 // pred_region
          _
        $region32: #{glimpse.1} parent=11 // pred_fallthru
          _
      $region12: #{glimpse.1} parent=5 // pred_fallthru
        _
      %p256 = scmp.lt.s32.totalorder %s17, 2
      // Predicated region
      $region33: #{glimpse.1} parent=5 // pred_check
        %p257 = pneg %p256
      $region34: #{glimpse.1} parent=5 // pred_check_branch
        %259 = sbr.rel (%p257) target = $region36
      $region35: #{glimpse.1} parent=5 // pred_region
        // Predicated region
        $region37: #{glimpse.1} parent=35 // pred_check
          %p260 = pneg %p37
        $region38: #{glimpse.1} parent=35 // pred_check_branch
          %262 = sbr.rel (%p260) target = $region40
        $region39: #{glimpse.1} parent=35 // pred_region
          %p263 = scmp.lt.s32.totalorder %s17, 1
          %s264 = scalar_select %p263, %s17, 1
          %s265 = scalar_lea.vmem %s0, %s264
        $region40: #{glimpse.1} parent=35 // pred_fallthru
          _
        // Predicated region
        $region41: #{glimpse.1} parent=35 // pred_check
          %p266 = pneg %p63
        $region42: #{glimpse.1} parent=35 // pred_check_branch
          %268 = sbr.rel (%p266) target = $region44
        $region43: #{glimpse.1} parent=35 // pred_region
          %p269 = scmp.lt.s32.totalorder %s17, 1
          %s270 = scalar_select %p269, %s17, 1
          %s271 = smul.addr %s270, 8
          %s272 = scalar_lea.vmem %s1, %s271
        $region44: #{glimpse.1} parent=35 // pred_fallthru
          _
        // Predicated region
        $region45: #{glimpse.1} parent=35 // pred_check
          %p273 = pneg %p89
        $region46: #{glimpse.1} parent=35 // pred_check_branch
          %275 = sbr.rel (%p273) target = $region48
        $region47: #{glimpse.1} parent=35 // pred_region
          %p276 = scmp.lt.s32.totalorder %s17, 1
          %s277 = scalar_select %p276, %s17, 1
          %s278 = smul.addr %s277, 8
          %s279 = scalar_lea.vmem %s2, %s278
        $region48: #{glimpse.1} parent=35 // pred_fallthru
          _
      $region36: #{glimpse.1} parent=5 // pred_fallthru
        _
      %p280 = scmp.le.s32.totalorder 1, %s17
      %p281 = scmp.lt.s32.totalorder %s17, 3
      %p282 = pnand %p280, %p281
      %p283 = pneg %p282
      // Predicated region
      $region49: #{glimpse.1} parent=5 // pred_check
        _
      $region50: #{glimpse.1} parent=5 // pred_check_branch
        %285 = sbr.rel (%p282) target = $region52
      $region51: #{glimpse.1} parent=5 // pred_region
        %s286 = ssub.s32 %s17, 1
        %p287 = scmp.lt.s32.totalorder %s22, 1
        %s288 = scalar_select %p287, %s22, 1
        %s289 = scalar_lea.vmem %s0, %s288
        %p290 = pneg %p43
        %p291 = pneg %p40
        %p292 = scmp.lt.s32.totalorder %s22, 1
        %s293 = scalar_select %p292, %s22, 1
        %s294 = smul.addr %s293, 8
        %s295 = scalar_lea.vmem %s1, %s294
        %p296 = pneg %p69
        %p297 = pneg %p66
        %p298 = scmp.lt.s32.totalorder %s22, 1
        %s299 = scalar_select %p298, %s22, 1
        %s300 = smul.addr %s299, 8
        %s301 = scalar_lea.vmem %s2, %s300
        %p302 = pneg %p95
        %p303 = pneg %p92
        %p304 = pneg %p116
        %p305 = pneg %p113
        %p306 = pneg %p137
        %p307 = pneg %p134
        %p308 = pneg %p158
        %p309 = pneg %p155
        %p310 = pneg %p179
        %p311 = pneg %p176
        %p312 = pneg %p200
        %p313 = pneg %p197
        %p314 = pneg %p226
        %p315 = pneg %p223
        %s316 = sand.u32 %s213, 1
        %s317 = scalar_lea.sflag [#allocation3], %s316
        %s318 = sand.u32 %s213, 1
        %s319 = scalar_lea.vmem [#allocation2], %s318
        %p320 = scmp.lt.s32.totalorder %s22, 1
        %s321 = scalar_select %p320, %s22, 1
        %s322 = scalar_lea.vmem %s0, %s321
        %p323 = scmp.lt.s32.totalorder %s22, 1
        %s324 = scalar_select %p323, %s22, 1
        %s325 = smul.addr %s324, 8
        %s326 = scalar_lea.vmem %s1, %s325
        %p327 = scmp.lt.s32.totalorder %s22, 1
        %s328 = scalar_select %p327, %s22, 1
        %s329 = smul.addr %s328, 8
        %s330 = scalar_lea.vmem %s2, %s329
        %v331 = vld [vmem:[%s322] sm:$0x1]
        %v332 = vld [vmem:[%s326] sm:$0xff]
        %v333 = vld [vmem:[%s330] sm:$0xff]
        %v334 = vld [vmem:[%s7] sm:$0xff]
        %v335 = vld [vmem:[%s7 + $0x8] sm:$0xff]
        %v336 = vld [vmem:[%s7 + $0x10] sm:$0xff]
        %v337 = vld [vmem:[%s7 + $0x18] sm:$0xff]
        %v338 = vld [vmem:[%s3] sm:$0xff]
        %v339 = vld [vmem:[%s3 + $0x8] sm:$0xff]
        %v340 = vld [vmem:[%s3 + $0x10] sm:$0xff]
        %v341 = vld [vmem:[%s3 + $0x18] sm:$0xff]
        %v342 = vld [vmem:[%s4] sm:$0x1]
        %vm343 = vcmask 261120
        %v345 = vsel %vm343, %v331, 0
        %347 = vmatprep.subr.mxu0 0.0
        %348 = vmatpush1.msra.mxu0 %v338
        %349 = vmatprep.subr.mxu0 0.0
        %350 = vmatpush1.msra.mxu0 %v339
        %351 = vmatprep.subr.mxu0 0.0
        %352 = vmatpush1.msra.mxu0 %v340
        %353 = vmatprep.subr.mxu0 0.0
        %354 = vmatpush1.msra.mxu0 %v341
        %355 = vmatprep.subr.mxu0 0.0
        %356 = vmatpush1.msra.mxu0 0.0
        %357 = vmatprep.subr.mxu0 0.0
        %358 = vmatpush1.msra.mxu0 0.0
        %359 = vmatprep.subr.mxu0 0.0
        %360 = vmatpush1.msra.mxu0 0.0
        %361 = vmatprep.subr.mxu0 0.0
        %362 = vmatpush1.msra.mxu0 0.0
        %363 = vmatprep.subr.mxu0 0.0
        %364 = vmatpush1.msra.mxu0 0.0
        %365 = vmatprep.subr.mxu0 0.0
        %366 = vmatpush1.msra.mxu0 0.0
        %367 = vmatprep.subr.mxu0 0.0
        %368 = vmatpush1.msra.mxu0 0.0
        %369 = vmatprep.subr.mxu0 0.0
        %370 = vmatpush1.msra.mxu0 0.0
        %371 = vmatprep.subr.mxu0 0.0
        %372 = vmatpush1.msra.mxu0 0.0
        %373 = vmatprep.subr.mxu0 0.0
        %374 = vmatpush1.msra.mxu0 0.0
        %375 = vmatprep.subr.mxu0 0.0
        %376 = vmatpush1.msra.mxu0 0.0
        %377 = vmatprep.subr.mxu0 0.0
        %378 = vmatpush1.msra.mxu0 0.0
        %379 = vmatprep.subr.mxu0 0.0
        %380 = vmatpush1.msra.mxu0 0.0
        %381 = vmatprep.subr.mxu0 0.0
        %382 = vmatpush1.msra.mxu0 0.0
        %383 = vmatprep.subr.mxu0 0.0
        %384 = vmatpush1.msra.mxu0 0.0
        %385 = vmatprep.subr.mxu0 0.0
        %386 = vmatpush1.msra.mxu0 0.0
        %387 = vmatprep.subr.mxu0 0.0
        %388 = vmatpush1.msra.mxu0 0.0
        %389 = vmatprep.subr.mxu0 0.0
        %390 = vmatpush1.msra.mxu0 0.0
        %391 = vmatprep.subr.mxu0 0.0
        %392 = vmatpush1.msra.mxu0 0.0
        %393 = vmatprep.subr.mxu0 0.0
        %394 = vmatpush1.msra.mxu0 0.0
        %395 = vmatprep.subr.mxu0 0.0
        %396 = vmatpush1.msra.mxu0 0.0
        %397 = vmatprep.subr.mxu0 0.0
        %398 = vmatpush1.msra.mxu0 0.0
        %399 = vmatprep.subr.mxu0 0.0
        %400 = vmatpush1.msra.mxu0 0.0
        %401 = vmatprep.subr.mxu0 0.0
        %402 = vmatpush1.msra.mxu0 0.0
        %403 = vmatprep.subr.mxu0 0.0
        %404 = vmatpush1.msra.mxu0 0.0
        %405 = vmatprep.subr.mxu0 0.0
        %406 = vmatpush1.msra.mxu0 0.0
        %407 = vmatprep.subr.mxu0 0.0
        %408 = vmatpush1.msra.mxu0 0.0
        %409 = vmatprep.subr.mxu0 0.0
        %410 = vmatpush1.msra.mxu0 0.0
        %411 = vmatprep.mubr.f32.mxu0 0.0
        %412 = vmatmul.mubr.f32.gmra.mrb[0].mxu0 %v345
        %v413 = vpop.f32.mrb[0].mxu0
        %v414 = vadd.f32 %v342, %v413
        %v415 = vpop.f32.mrb[0].mxu0
        %416 = vdwg.mxu0
        %v417 = vld [vmem:[%s5] sm:$0xff]
        %v418 = vld [vmem:[%s5 + $0x8] sm:$0xff]
        %v419 = vld [vmem:[%s5 + $0x10] sm:$0xff]
        %v420 = vld [vmem:[%s5 + $0x18] sm:$0xff]
        %v421 = vld [vmem:[%s6] sm:$0x1]
        %v423 = vlaneseq
        %v424 = vshrl.u32 %v423, 7
        %v425 = vsub.s32 0, %v424
        %v426 = vrot.slane %v421, %v425
        %v429 = vsel %vm343, %v332, 0
        %431 = vmatprep.subr.mxu0 0.0
        %432 = vmatpush1.msra.mxu0 %v417
        %433 = vmatprep.subr.mxu0 0.0
        %434 = vmatpush1.msra.mxu0 %v418
        %435 = vmatprep.subr.mxu0 0.0
        %436 = vmatpush1.msra.mxu0 %v419
        %437 = vmatprep.subr.mxu0 0.0
        %438 = vmatpush1.msra.mxu0 %v420
        %439 = vmatprep.subr.mxu0 0.0
        %440 = vmatpush1.msra.mxu0 0.0
        %441 = vmatprep.subr.mxu0 0.0
        %442 = vmatpush1.msra.mxu0 0.0
        %443 = vmatprep.subr.mxu0 0.0
        %444 = vmatpush1.msra.mxu0 0.0
        %445 = vmatprep.subr.mxu0 0.0
        %446 = vmatpush1.msra.mxu0 0.0
        %447 = vmatprep.subr.mxu0 0.0
        %448 = vmatpush1.msra.mxu0 0.0
        %449 = vmatprep.subr.mxu0 0.0
        %450 = vmatpush1.msra.mxu0 0.0
        %451 = vmatprep.subr.mxu0 0.0
        %452 = vmatpush1.msra.mxu0 0.0
        %453 = vmatprep.subr.mxu0 0.0
        %454 = vmatpush1.msra.mxu0 0.0
        %455 = vmatprep.subr.mxu0 0.0
        %456 = vmatpush1.msra.mxu0 0.0
        %457 = vmatprep.subr.mxu0 0.0
        %458 = vmatpush1.msra.mxu0 0.0
        %459 = vmatprep.subr.mxu0 0.0
        %460 = vmatpush1.msra.mxu0 0.0
        %461 = vmatprep.subr.mxu0 0.0
        %462 = vmatpush1.msra.mxu0 0.0
        %463 = vmatprep.subr.mxu0 0.0
        %464 = vmatpush1.msra.mxu0 0.0
        %465 = vmatprep.subr.mxu0 0.0
        %466 = vmatpush1.msra.mxu0 0.0
        %467 = vmatprep.subr.mxu0 0.0
        %468 = vmatpush1.msra.mxu0 0.0
        %469 = vmatprep.subr.mxu0 0.0
        %470 = vmatpush1.msra.mxu0 0.0
        %471 = vmatprep.subr.mxu0 0.0
        %472 = vmatpush1.msra.mxu0 0.0
        %473 = vmatprep.subr.mxu0 0.0
        %474 = vmatpush1.msra.mxu0 0.0
        %475 = vmatprep.subr.mxu0 0.0
        %476 = vmatpush1.msra.mxu0 0.0
        %477 = vmatprep.subr.mxu0 0.0
        %478 = vmatpush1.msra.mxu0 0.0
        %479 = vmatprep.subr.mxu0 0.0
        %480 = vmatpush1.msra.mxu0 0.0
        %481 = vmatprep.subr.mxu0 0.0
        %482 = vmatpush1.msra.mxu0 0.0
        %483 = vmatprep.subr.mxu0 0.0
        %484 = vmatpush1.msra.mxu0 0.0
        %485 = vmatprep.subr.mxu0 0.0
        %486 = vmatpush1.msra.mxu0 0.0
        %487 = vmatprep.subr.mxu0 0.0
        %488 = vmatpush1.msra.mxu0 0.0
        %489 = vmatprep.subr.mxu0 0.0
        %490 = vmatpush1.msra.mxu0 0.0
        %491 = vmatprep.subr.mxu0 0.0
        %492 = vmatpush1.msra.mxu0 0.0
        %493 = vmatprep.subr.mxu0 0.0
        %494 = vmatpush1.msra.mxu0 0.0
        %495 = vmatprep.mubr.f32.mxu0 0.0
        %496 = vmatmul.mubr.f32.gmra.mrb[0].mxu0 %v429
        %v497 = vpop.f32.mrb[0].mxu0
        %v498 = vadd.f32 %v426, %v497
        %v499 = vpop.f32.mrb[0].mxu0
        %500 = vdwg.mxu0
        %v501 = vlaneseq
        %v502 = vshrl.u32 %v501, 7
        %v503 = vsub.s32 0, %v502
        %v504 = vrot.slane %v414, %v503
        %v505 = vmul.f32 %v498, %v504
        %v507 = vsel %vm343, %v505, 0
        %509 = vmatprep.subr.mxu0 0.0
        %510 = vmatpush1.msra.mxu0 %v334
        %511 = vmatprep.subr.mxu0 0.0
        %512 = vmatpush1.msra.mxu0 %v335
        %513 = vmatprep.subr.mxu0 0.0
        %514 = vmatpush1.msra.mxu0 %v336
        %515 = vmatprep.subr.mxu0 0.0
        %516 = vmatpush1.msra.mxu0 %v337
        %517 = vmatprep.subr.mxu0 0.0
        %518 = vmatpush1.msra.mxu0 0.0
        %519 = vmatprep.subr.mxu0 0.0
        %520 = vmatpush1.msra.mxu0 0.0
        %521 = vmatprep.subr.mxu0 0.0
        %522 = vmatpush1.msra.mxu0 0.0
        %523 = vmatprep.subr.mxu0 0.0
        %524 = vmatpush1.msra.mxu0 0.0
        %525 = vmatprep.subr.mxu0 0.0
        %526 = vmatpush1.msra.mxu0 0.0
        %527 = vmatprep.subr.mxu0 0.0
        %528 = vmatpush1.msra.mxu0 0.0
        %529 = vmatprep.subr.mxu0 0.0
        %530 = vmatpush1.msra.mxu0 0.0
        %531 = vmatprep.subr.mxu0 0.0
        %532 = vmatpush1.msra.mxu0 0.0
        %533 = vmatprep.subr.mxu0 0.0
        %534 = vmatpush1.msra.mxu0 0.0
        %535 = vmatprep.subr.mxu0 0.0
        %536 = vmatpush1.msra.mxu0 0.0
        %537 = vmatprep.subr.mxu0 0.0
        %538 = vmatpush1.msra.mxu0 0.0
        %539 = vmatprep.subr.mxu0 0.0
        %540 = vmatpush1.msra.mxu0 0.0
        %541 = vmatprep.subr.mxu0 0.0
        %542 = vmatpush1.msra.mxu0 0.0
        %543 = vmatprep.subr.mxu0 0.0
        %544 = vmatpush1.msra.mxu0 0.0
        %545 = vmatprep.subr.mxu0 0.0
        %546 = vmatpush1.msra.mxu0 0.0
        %547 = vmatprep.subr.mxu0 0.0
        %548 = vmatpush1.msra.mxu0 0.0
        %549 = vmatprep.subr.mxu0 0.0
        %550 = vmatpush1.msra.mxu0 0.0
        %551 = vmatprep.subr.mxu0 0.0
        %552 = vmatpush1.msra.mxu0 0.0
        %553 = vmatprep.subr.mxu0 0.0
        %554 = vmatpush1.msra.mxu0 0.0
        %555 = vmatprep.subr.mxu0 0.0
        %556 = vmatpush1.msra.mxu0 0.0
        %557 = vmatprep.subr.mxu0 0.0
        %558 = vmatpush1.msra.mxu0 0.0
        %559 = vmatprep.subr.mxu0 0.0
        %560 = vmatpush1.msra.mxu0 0.0
        %561 = vmatprep.subr.mxu0 0.0
        %562 = vmatpush1.msra.mxu0 0.0
        %563 = vmatprep.subr.mxu0 0.0
        %564 = vmatpush1.msra.mxu0 0.0
        %565 = vmatprep.subr.mxu0 0.0
        %566 = vmatpush1.msra.mxu0 0.0
        %567 = vmatprep.subr.mxu0 0.0
        %568 = vmatpush1.msra.mxu0 0.0
        %569 = vmatprep.subr.mxu0 0.0
        %570 = vmatpush1.msra.mxu0 0.0
        %571 = vmatprep.subr.mxu0 0.0
        %572 = vmatpush1.msra.mxu0 0.0
        %573 = vmatprep.mubr.f32.mxu0 0.0
        %574 = vmatmul.mubr.f32.gmra.mrb[0].mxu0 %v507
        %v575 = vpop.f32.mrb[0].mxu0
        %v576 = vadd.f32 0.0, %v575
        %v577 = vpop.f32.mrb[0].mxu0
        %578 = vdwg.mxu0
        %v579 = vmul.f32 %v576, 0.35355338
        %vm580 = vcmp.gt.f32.partialorder %v333, 0.5
        %v581 = vsel %vm580, 1, 0
        %582 = vset.pattern.permute.xlu0 0
        %583 = vperm.xlu0 %582, %v581
        %v584 = vpop.permute.xlu0 %583
        %vm585 = vcmp.eq.s32.totalorder %v584, 1
        %v586 = vsel %vm585, -1000000.0, %v579
        %vm587 = vcmask 31744
        %v588 = vsel %vm587, %v586, -inf
        %v589 = vrot.slane %v588, 4
        %v590 = vmax.f32 %v588, %v589
        %v591 = vrot.slane %v590, 2
        %v592 = vmax.f32 %v590, %v591
        %v593 = vrot.slane %v592, 1
        %v594 = vmax.f32 %v592, %v593
        %v595 = vsub.f32 %v586, %v594
        %v596 = vmul.f32 %v595, 1.442695
        %v597 = vpow.pop %v596
        %v598 = vsel %vm587, %v597, 0.0
        %v599 = vrot.slane %v598, 4
        %v600 = vadd.f32 %v598, %v599
        %v601 = vrot.slane %v600, 2
        %v602 = vadd.f32 %v600, %v601
        %v603 = vrot.slane %v602, 1
        %v604 = vadd.f32 %v602, %v603
        %v605 = vrcp.pop %v604
        %v606 = vmul.f32 %v597, %v605
        %v608 = vsel %vm587, %v606, 0
        %v611 = vsel %vm587, %v334, 0
        %v614 = vsel %vm587, %v335, 0
        %v617 = vsel %vm587, %v336, 0
        %v620 = vsel %vm587, %v337, 0
        %622 = vmatprep.subr.mxu0 0.0
        %623 = vmatpush1.xpose.msra.mxu0 %v611
        %624 = vmatprep.subr.mxu0 0.0
        %625 = vmatpush1.xpose.msra.mxu0 %v614
        %626 = vmatprep.subr.mxu0 0.0
        %627 = vmatpush1.xpose.msra.mxu0 %v617
        %628 = vmatprep.subr.mxu0 0.0
        %629 = vmatpush1.xpose.msra.mxu0 %v620
        %630 = vmatprep.subr.mxu0 0.0
        %631 = vmatpush1.xpose.msra.mxu0 0.0
        %632 = vmatprep.subr.mxu0 0.0
        %633 = vmatpush1.xpose.msra.mxu0 0.0
        %634 = vmatprep.subr.mxu0 0.0
        %635 = vmatpush1.xpose.msra.mxu0 0.0
        %636 = vmatprep.subr.mxu0 0.0
        %637 = vmatpush1.xpose.msra.mxu0 0.0
        %638 = vmatprep.subr.mxu0 0.0
        %639 = vmatpush1.xpose.msra.mxu0 0.0
        %640 = vmatprep.subr.mxu0 0.0
        %641 = vmatpush1.xpose.msra.mxu0 0.0
        %642 = vmatprep.subr.mxu0 0.0
        %643 = vmatpush1.xpose.msra.mxu0 0.0
        %644 = vmatprep.subr.mxu0 0.0
        %645 = vmatpush1.xpose.msra.mxu0 0.0
        %646 = vmatprep.subr.mxu0 0.0
        %647 = vmatpush1.xpose.msra.mxu0 0.0
        %648 = vmatprep.subr.mxu0 0.0
        %649 = vmatpush1.xpose.msra.mxu0 0.0
        %650 = vmatprep.subr.mxu0 0.0
        %651 = vmatpush1.xpose.msra.mxu0 0.0
        %652 = vmatprep.subr.mxu0 0.0
        %653 = vmatpush1.xpose.msra.mxu0 0.0
        %654 = vmatprep.subr.mxu0 0.0
        %655 = vmatpush1.xpose.msra.mxu0 0.0
        %656 = vmatprep.subr.mxu0 0.0
        %657 = vmatpush1.xpose.msra.mxu0 0.0
        %658 = vmatprep.subr.mxu0 0.0
        %659 = vmatpush1.xpose.msra.mxu0 0.0
        %660 = vmatprep.subr.mxu0 0.0
        %661 = vmatpush1.xpose.msra.mxu0 0.0
        %662 = vmatprep.subr.mxu0 0.0
        %663 = vmatpush1.xpose.msra.mxu0 0.0
        %664 = vmatprep.subr.mxu0 0.0
        %665 = vmatpush1.xpose.msra.mxu0 0.0
        %666 = vmatprep.subr.mxu0 0.0
        %667 = vmatpush1.xpose.msra.mxu0 0.0
        %668 = vmatprep.subr.mxu0 0.0
        %669 = vmatpush1.xpose.msra.mxu0 0.0
        %670 = vmatprep.subr.mxu0 0.0
        %671 = vmatpush1.xpose.msra.mxu0 0.0
        %672 = vmatprep.subr.mxu0 0.0
        %673 = vmatpush1.xpose.msra.mxu0 0.0
        %674 = vmatprep.subr.mxu0 0.0
        %675 = vmatpush1.xpose.msra.mxu0 0.0
        %676 = vmatprep.subr.mxu0 0.0
        %677 = vmatpush1.xpose.msra.mxu0 0.0
        %678 = vmatprep.subr.mxu0 0.0
        %679 = vmatpush1.xpose.msra.mxu0 0.0
        %680 = vmatprep.subr.mxu0 0.0
        %681 = vmatpush1.xpose.msra.mxu0 0.0
        %682 = vmatprep.subr.mxu0 0.0
        %683 = vmatpush1.xpose.msra.mxu0 0.0
        %684 = vmatprep.subr.mxu0 0.0
        %685 = vmatpush1.xpose.msra.mxu0 0.0
        %686 = vmatprep.mubr.f32.mxu0 0.0
        %687 = vmatmul.mubr.f32.gmra.mrb[0].mxu0 %v608
        %v688 = vpop.f32.mrb[0].mxu0
        %v689 = vadd.f32 0.0, %v688
        %v690 = vpop.f32.mrb[0].mxu0
        %691 = vdwg.mxu0
        %693 = vrot.lane.b32.xlu0 %v498, 96
        %v694 = vpop.permute.xlu0 %693
        %v696 = vmul.f32 %v689, %v694
        %v697 = vsel %vm343, %v696, 0.0
        %v698 = vrot.slane %v697, 4
        %v699 = vadd.f32 %v697, %v698
        %v700 = vrot.slane %v699, 2
        %v701 = vadd.f32 %v699, %v700
        %v702 = vrot.slane %v701, 1
        %v703 = vadd.f32 %v701, %v702
        %vm704 = vcmask 253952
        %705 = vst.msk [vmem:[%s319] sm:$0x1] %vm704, %v703
        %s706 = sand.u32 %s213, 1
        %s707 = scalar_lea.sflag [#allocation3], %s706
        %s708 = sand.u32 %s213, 1
        %s709 = scalar_lea.vmem [#allocation2], %s708
        // Predicated region
        $region53: #{glimpse.1} parent=51 // pred_check
          %p710 = pneg %p223
        $region54: #{glimpse.1} parent=51 // pred_check_branch
          %712 = sbr.rel (%p710) target = $region56
        $region55: #{glimpse.1} parent=51 // pred_region
          %s714 = ssub.s32 16, 16
          %715 = vsyncadd %s707, %s714
          %s716 = smul.addr %s22, 16
          %s717 = scalar_lea.hbm %s8, %s716
          %s719 = sshll.u32 %s709, 4
          %s720 = int_to_ptr.vmem [resolvable:$true] %s719
          %722 = dma.vmem_to_hbm [thread:$0]  %s720, 16, %s717, %s707
        $region56: #{glimpse.1} parent=51 // pred_fallthru
          _
      $region52: #{glimpse.1} parent=5 // pred_fallthru
        _
      %p723 = scmp.le.s32.totalorder 2, %s17
      // Predicated region
      $region57: #{glimpse.1} parent=5 // pred_check
        %p724 = pneg %p723
      $region58: #{glimpse.1} parent=5 // pred_check_branch
        %726 = sbr.rel (%p724) target = $region60
      $region59: #{glimpse.1} parent=5 // pred_region
        %s727 = ssub.s32 %s17, 2
        // Predicated region
        $region61: #{glimpse.1} parent=59 // pred_check
          %p728 = pneg %p229
        $region62: #{glimpse.1} parent=59 // pred_check_branch
          %730 = sbr.rel (%p728) target = $region64
        $region63: #{glimpse.1} parent=59 // pred_region
          %s731 = sand.u32 %s214, 1
          %s732 = scalar_lea.sflag [#allocation3], %s731
          %s733 = sand.u32 %s214, 1
          %s734 = scalar_lea.vmem [#allocation2], %s733
          %735 = dma.done %s732, 16
        $region64: #{glimpse.1} parent=59 // pred_fallthru
          _
      $region60: #{glimpse.1} parent=5 // pred_fallthru
        _
    $region6: #{glimpse.1} parent=1 // loop_footer
      %s21 = sadd.s32 1, %s17
    $region7: #{glimpse.1} parent=1 // loop_footer_branch
      %16 = sbr.rel target = $region3
    $region8: #{glimpse.1} parent=1 // loop_exit
      _
    %736 = vsyncpa [#allocation3], 1
    %s737 = scalar_lea.sflag [#allocation3], 1
    %738 = vsyncpa %s737, 1

</llo_original>
